<compile_context>
chip_gen: v6e
topology: v6e:2x2x1
jax: 0.10.0
libtpu: 0.0.40
codegen_flags: <defaults>
</compile_context>

<pallas_src>
import functools
import math

import jax
import jax.numpy as jnp
from jax.experimental import pallas as pl
from jax.experimental.pallas import tpu as pltpu

_LANE = 128


# --------------------------------------------------------------------------
# Helpers
# --------------------------------------------------------------------------
def _lane_bcast(x, n):
    """Broadcast a lane-replicated (rows, 128) array to (rows, n)."""
    if n == _LANE:
        return x
    if n < _LANE:
        return x[:, :n]
    if n % _LANE == 0:
        return jnp.tile(x, (1, n // _LANE))
    return jnp.broadcast_to(x[:, :1], (x.shape[0], n))


def _pick_tile(n, max_tile):
    """Largest divisor of n <= max_tile, preferring multiples of 256 (v6e/v7x
    2x256^2 MXU), then 128 (v5e 4x128^2), then 8; else n itself (full block)."""
    if n <= max_tile:
        return n
    for step in (256, 128, 8):
        t = (max_tile // step) * step
        while t >= step:
            if n % t == 0:
                return t
            t -= step
    return n


def _vmem_limit(nbytes):
    """Explicit scoped-VMEM budget: ~1.5x the static working set, clamped so it
    is valid on v5e/v6e (128 MiB physical) and v7x (64 MiB physical)."""
    return int(max(32 << 20, min(nbytes * 3 // 2 + (2 << 20), 64 << 20)))


# --------------------------------------------------------------------------
# Kernels
# --------------------------------------------------------------------------
def _qkv_proj_kernel(xk_ref, xv_ref, xq_ref,
                     wk_ref, wv_ref, wq_ref,
                     bk_ref, bv_ref, bq_ref,
                     k_out_ref, v_out_ref, q_out_ref):
    """Per (batch, seq-tile): three bf16 MXU projections, lane-dense stores."""

    def project(x_ref, w_ref, b_ref, o_ref):
        x = x_ref[0].astype(w_ref.dtype)                          # [ts, D] bf16
        y = jnp.dot(x, w_ref[...],
                    preferred_element_type=jnp.float32) + b_ref[...]
        o_ref[0] = y.astype(o_ref.dtype)                          # one D-wide store

    project(xk_ref, wk_ref, bk_ref, k_out_ref)
    project(xv_ref, wv_ref, bv_ref, v_out_ref)
    project(xq_ref, wq_ref, bq_ref, q_out_ref)


def _qkv_proj_fused_kernel(x_ref, w_ref, b_ref,
                           k_out_ref, v_out_ref, q_out_ref, *, model_dim):
    """Self-attention fast path: one [ts, D] @ [D, 3D] matmul produces K|V|Q."""
    D = model_dim
    x = x_ref[0].astype(w_ref.dtype)                              # [ts, D] bf16
    y = jnp.dot(x, w_ref[...],
                preferred_element_type=jnp.float32) + b_ref[...]  # [ts, 3D] f32
    y = y.astype(k_out_ref.dtype)
    k_out_ref[0] = y[:, 0:D]
    v_out_ref[0] = y[:, D:2 * D]
    q_out_ref[0] = y[:, 2 * D:3 * D]


def _attn_out_kernel(q_ref, k_ref, v_ref, wo_ref, bo_ref, out_ref,
                     m_sc, l_sc, acc_sc, *, head_count, dim_per_head):
    """Flash attention for all heads of one (batch, q-tile) over KV tiles,
    with the final output projection fused at the last KV step."""
    H, dh = head_count, dim_per_head
    ki = pl.program_id(2)

    @pl.when(ki == 0)
    def _init():
        m_sc[...] = jnp.full(m_sc.shape, -jnp.inf, dtype=jnp.float32)
        l_sc[...] = jnp.zeros(l_sc.shape, dtype=jnp.float32)
        acc_sc[...] = jnp.zeros(acc_sc.shape, dtype=jnp.float32)

    q = q_ref[0]                       # [tq, D] bf16 (Q already scaled by 1/sqrt(dh))
    k = k_ref[0]                       # [tk, D] bf16
    v = v_ref[0]                       # [tk, D] bf16
    tk = k.shape[0]

    for h in range(H):                 # static unroll over heads
        lo = h * dh
        q_h = q[:, lo:lo + dh]
        k_h = k[:, lo:lo + dh]
        v_h = v[:, lo:lo + dh]

        # scores: contract last axes directly (no k.T relayout), f32 accumulate
        s = jax.lax.dot_general(q_h, k_h, (((1,), (1,)), ((), ())),
                                preferred_element_type=jnp.float32)   # [tq, tk]

        m_prev = m_sc[h]                                              # [tq, 128]
        m_next = jnp.maximum(m_prev, jnp.max(s, axis=-1, keepdims=True))
        alpha = jnp.exp(m_prev - m_next)                              # [tq, 128]
        p = jnp.exp(s - _lane_bcast(m_next, tk))                      # [tq, tk] f32
        l_sc[h] = alpha * l_sc[h] + jnp.sum(p, axis=-1, keepdims=True)
        acc_sc[h] = _lane_bcast(alpha, dh) * acc_sc[h] + jnp.dot(
            p.astype(v_h.dtype), v_h, preferred_element_type=jnp.float32)
        m_sc[h] = m_next

    @pl.when(ki == pl.num_programs(2) - 1)
    def _finalize():
        parts = []
        for h in range(H):
            inv_l = pl.reciprocal(l_sc[h], approx=True)               # EUP slot
            parts.append((acc_sc[h] * _lane_bcast(inv_l, dh)).astype(wo_ref.dtype))
        ctx = jnp.concatenate(parts, axis=-1)                         # [tq, D] bf16
        out = jnp.dot(ctx, wo_ref[...],
                      preferred_element_type=jnp.float32) + bo_ref[...]
        out_ref[0] = out.astype(out_ref.dtype)                        # lane-dense store


# --------------------------------------------------------------------------
# Parameter prep + wrapper
# --------------------------------------------------------------------------
def prepare_params(params, *, head_count, model_dim):
    """One-time parameter prep (not per forward): transpose weights to [in, out],
    fold 1/sqrt(dim_per_head) into Wq/bq, cast matmul weights to bf16, build the
    fused [D, 3D] self-attention weight, keep biases in f32."""
    D = model_dim
    dh = D // head_count
    scale = 1.0 / math.sqrt(dh)
    wk = params["wk"].T.astype(jnp.bfloat16)
    wv = params["wv"].T.astype(jnp.bfloat16)
    wq = (params["wq"].T * scale).astype(jnp.bfloat16)
    bk = params["bk"].reshape(1, D).astype(jnp.float32)
    bv = params["bv"].reshape(1, D).astype(jnp.float32)
    bq = (params["bq"] * scale).reshape(1, D).astype(jnp.float32)
    return {
        "wk": wk, "wv": wv, "wq": wq, "bk": bk, "bv": bv, "bq": bq,
        "w_kvq": jnp.concatenate([wk, wv, wq], axis=1),   # [D, 3D] bf16
        "b_kvq": jnp.concatenate([bk, bv, bq], axis=1),   # [1, 3D] f32
        "wo": params["wo"].T.astype(jnp.bfloat16),        # [D, D]
        "bo": params["bo"].reshape(1, D).astype(jnp.float32),
    }


def multi_headed_attention(key, value, query, prepped, *, head_count,
                           seq_tile=256, q_tile=256, kv_tile=256):
    """key/value/query: [B, S, D] float32. `prepped` from prepare_params()."""
    B, S, D = query.shape
    assert D % head_count == 0
    H = head_count
    dh = D // H

    ts = _pick_tile(S, seq_tile)
    # q_tile=512 is a small extra win on v5e (halves K/V re-streaming); 256
    # keeps scratch + blocks comfortably inside v7x's 64 MiB VMEM by default.
    tq = _pick_tile(S, q_tile)
    tk = _pick_tile(S, kv_tile)
    nq, nkv = S // tq, S // tk
    out_itemsize = jnp.dtype(query.dtype).itemsize

    # ------------- stage 1: QKV projections -> 3x [B, S, D] bf16 (lane dense) --
    seq_spec = pl.BlockSpec((1, ts, D), lambda b, si: (b, si, 0))
    proj_out_spec = pl.BlockSpec((1, ts, D), lambda b, si: (b, si, 0))
    fused_inputs = (key is value) and (value is query)     # self-attention fast path

    if fused_inputs:
        # Constant-index weight blocks are DMA'd once per launch.  (Keeping the
        # default double-buffering; explicit vmem_limit_bytes covers the footprint.)
        w_spec = pl.BlockSpec((D, 3 * D), lambda b, si: (0, 0))
        bias_spec = pl.BlockSpec((1, 3 * D), lambda b, si: (0, 0))
        in_specs = [seq_spec, w_spec, bias_spec]
        args = (query, prepped["w_kvq"], prepped["b_kvq"])
        kern = functools.partial(_qkv_proj_fused_kernel, model_dim=D)
        vmem1 = (2 * ts * D * 4) + (2 * D * 3 * D * 2) + (2 * 3 * D * 4) \
            + (3 * 2 * ts * D * 2) + (ts * 3 * D * 4)
    else:
        w_spec = pl.BlockSpec((D, D), lambda b, si: (0, 0))
        bias_spec = pl.BlockSpec((1, D), lambda b, si: (0, 0))
        in_specs = [seq_spec, seq_spec, seq_spec,
                    w_spec, w_spec, w_spec, bias_spec, bias_spec, bias_spec]
        args = (key, value, query,
                prepped["wk"], prepped["wv"], prepped["wq"],
                prepped["bk"], prepped["bv"], prepped["bq"])
        kern = _qkv_proj_kernel
        vmem1 = (3 * 2 * ts * D * 4) + (3 * 2 * D * D * 2) + (3 * 2 * D * 4) \
            + (3 * 2 * ts * D * 2) + (ts * D * 4)

    k_p, v_p, q_p = pl.pallas_call(
        kern,
        out_shape=(jax.ShapeDtypeStruct((B, S, D), jnp.bfloat16),) * 3,
        grid_spec=pltpu.PrefetchScalarGridSpec(
            num_scalar_prefetch=0,
            grid=(B, S // ts),
            in_specs=in_specs,
            out_specs=[proj_out_spec, proj_out_spec, proj_out_spec]),
        compiler_params=pltpu.CompilerParams(
            dimension_semantics=("parallel", "parallel"),
            vmem_limit_bytes=_vmem_limit(vmem1)),
    )(*args)

    # ------------- stage 2: flash attention + output projection ---------------
    q_spec = pl.BlockSpec((1, tq, D), lambda b, qi, ki: (b, qi, 0))
    kv_spec = pl.BlockSpec((1, tk, D), lambda b, qi, ki: (b, ki, 0))
    wo_spec = pl.BlockSpec((D, D), lambda b, qi, ki: (0, 0))
    bo_spec = pl.BlockSpec((1, D), lambda b, qi, ki: (0, 0))
    out_spec = pl.BlockSpec((1, tq, D), lambda b, qi, ki: (b, qi, 0))

    vmem2 = (2 * tq * D * 2) + (2 * 2 * tk * D * 2) + (2 * D * D * 2) \
        + (2 * D * 4) + (2 * tq * D * out_itemsize) \
        + (2 * H * tq * _LANE * 4) + (H * tq * dh * 4)

    attn_kernel = functools.partial(
        _attn_out_kernel, head_count=H, dim_per_head=dh)

    out = pl.pallas_call(
        attn_kernel,
        out_shape=jax.ShapeDtypeStruct((B, S, D), query.dtype),
        grid_spec=pltpu.PrefetchScalarGridSpec(
            num_scalar_prefetch=0,
            grid=(B, nq, nkv),
            in_specs=[q_spec, kv_spec, kv_spec, wo_spec, bo_spec],
            out_specs=out_spec,
            scratch_shapes=[
                pltpu.VMEM((H, tq, _LANE), jnp.float32),   # running max (lane-replicated)
                pltpu.VMEM((H, tq, _LANE), jnp.float32),   # running sum (lane-replicated)
                pltpu.VMEM((H, tq, dh), jnp.float32),      # per-head context accumulator
            ]),
        compiler_params=pltpu.CompilerParams(
            dimension_semantics=("parallel", "parallel", "arbitrary"),
            vmem_limit_bytes=_vmem_limit(vmem2)),
    )(q_p, k_p, v_p, prepped["wo"], prepped["bo"])

    return out


# --------------------------------------------------------------------------
# Pure-JAX reference (mirrors the PyTorch forward, eval mode, f32)
# --------------------------------------------------------------------------
def _reference(key, value, query, params, *, head_count):
    B, S, D = key.shape
    dh = D // head_count

    def lin(x, w, b):
        return x @ w.T + b

    def split_heads(x):  # [B, S, D] -> [B, H, S, dh]
        return x.reshape(B, S, head_count, dh).transpose(0, 2, 1, 3)

    K = split_heads(lin(key, params["wk"], params["bk"]))
    V = split_heads(lin(value, params["wv"], params["bv"]))
    Q = split_heads(lin(query, params["wq"], params["bq"])) / math.sqrt(dh)

    scores = jnp.einsum("bhqd,bhkd->bhqk", Q, K)
    attn = jax.nn.softmax(scores, axis=-1)
    ctx = jnp.einsum("bhqk,bhkd->bhqd", attn, V)
    ctx = ctx.transpose(0, 2, 1, 3).reshape(B, S, D)
    return lin(ctx, params["wo"], params["bo"])


if __name__ == "__main__":
    B, S, D, H = 2, 8, 32, 4

    key_rng = jax.random.PRNGKey(0)
    ks = jax.random.split(key_rng, 11)

    # PyTorch nn.Linear-style params: W [out, in], b [out]
    bound = 1.0 / math.sqrt(D)
    params = {
        "wk": jax.random.uniform(ks[0], (D, D), jnp.float32, -bound, bound),
        "bk": jax.random.uniform(ks[1], (D,), jnp.float32, -bound, bound),
        "wv": jax.random.uniform(ks[2], (D, D), jnp.float32, -bound, bound),
        "bv": jax.random.uniform(ks[3], (D,), jnp.float32, -bound, bound),
        "wq": jax.random.uniform(ks[4], (D, D), jnp.float32, -bound, bound),
        "bq": jax.random.uniform(ks[5], (D,), jnp.float32, -bound, bound),
        "wo": jax.random.uniform(ks[6], (D, D), jnp.float32, -bound, bound),
        "bo": jax.random.uniform(ks[7], (D,), jnp.float32, -bound, bound),
    }

    key_in = jax.random.normal(ks[8], (B, S, D), jnp.float32)
    value_in = jax.random.normal(ks[9], (B, S, D), jnp.float32)
    query_in = jax.random.normal(ks[10], (B, S, D), jnp.float32)

    prepped = prepare_params(params, head_count=H, model_dim=D)  # one-time prep

    # Cross-attention path (three distinct inputs -> per-input projections).
    out = multi_headed_attention(key_in, value_in, query_in, prepped, head_count=H)
    out = jax.block_until_ready(out)
    ref = _reference(key_in, value_in, query_in, params, head_count=H)
    assert out.shape == (B, S, D)
    err = float(jnp.max(jnp.abs(out - ref)))
    # bf16 MXU operands (intentional, per perf guidance) -> relaxed tolerance vs f32 ref
    assert jnp.allclose(out, ref, atol=5e-2, rtol=5e-2), (
        f"cross-attn mismatch vs JAX reference (max abs err {err})")

    # Self-attention fast path (fused [D, 3D] QKV weight).
    out_sa = multi_headed_attention(query_in, query_in, query_in, prepped,
                                    head_count=H)
    out_sa = jax.block_until_ready(out_sa)
    ref_sa = _reference(query_in, query_in, query_in, params, head_count=H)
    err_sa = float(jnp.max(jnp.abs(out_sa - ref_sa)))
    assert jnp.allclose(out_sa, ref_sa, atol=5e-2, rtol=5e-2), (
        f"self-attn mismatch vs JAX reference (max abs err {err_sa})")

    print("KERNEL_OK")
</pallas_src>

<mosaic_0001>
module attributes {stable_mosaic.version = 11 : i64} {
  func.func @_qkv_proj_kernel(%arg0: i32, %arg1: i32, %arg2: memref<1x8x32xf32, #tpu.memory_space<vmem>>, %arg3: memref<1x8x32xf32, #tpu.memory_space<vmem>>, %arg4: memref<1x8x32xf32, #tpu.memory_space<vmem>>, %arg5: memref<32x32xbf16, #tpu.memory_space<vmem>>, %arg6: memref<32x32xbf16, #tpu.memory_space<vmem>>, %arg7: memref<32x32xbf16, #tpu.memory_space<vmem>>, %arg8: memref<1x32xf32, #tpu.memory_space<vmem>>, %arg9: memref<1x32xf32, #tpu.memory_space<vmem>>, %arg10: memref<1x32xf32, #tpu.memory_space<vmem>>, %arg11: memref<1x8x32xbf16, #tpu.memory_space<vmem>>, %arg12: memref<1x8x32xbf16, #tpu.memory_space<vmem>>, %arg13: memref<1x8x32xbf16, #tpu.memory_space<vmem>>) attributes {dimension_semantics = [#tpu.dimension_semantics<parallel>, #tpu.dimension_semantics<parallel>], iteration_bounds = array<i64: 2, 1>, scalar_prefetch = 0 : i64, scratch_operands = 0 : i64, tpu.core_type = #tpu.core_type<tc>, window_params = [{transform_indices = @transform_0, window_bounds = array<i64: 1, 8, 32>}, {transform_indices = @transform_1, window_bounds = array<i64: 1, 8, 32>}, {transform_indices = @transform_2, window_bounds = array<i64: 1, 8, 32>}, {pipeline_mode = #tpu.pipeline_mode<synchronous>, transform_indices = @transform_3, window_bounds = array<i64: 32, 32>}, {pipeline_mode = #tpu.pipeline_mode<synchronous>, transform_indices = @transform_4, window_bounds = array<i64: 32, 32>}, {pipeline_mode = #tpu.pipeline_mode<synchronous>, transform_indices = @transform_5, window_bounds = array<i64: 32, 32>}, {pipeline_mode = #tpu.pipeline_mode<synchronous>, transform_indices = @transform_6, window_bounds = array<i64: 1, 32>}, {pipeline_mode = #tpu.pipeline_mode<synchronous>, transform_indices = @transform_7, window_bounds = array<i64: 1, 32>}, {pipeline_mode = #tpu.pipeline_mode<synchronous>, transform_indices = @transform_8, window_bounds = array<i64: 1, 32>}, {transform_indices = @transform_9, window_bounds = array<i64: 1, 8, 32>}, {transform_indices = @transform_10, window_bounds = array<i64: 1, 8, 32>}, {transform_indices = @transform_11, window_bounds = array<i64: 1, 8, 32>}]} {
    %c0 = arith.constant 0 : index
    %c0_0 = arith.constant 0 : index
    %c0_1 = arith.constant 0 : index
    %0 = vector.load %arg2[%c0, %c0_0, %c0_1] : memref<1x8x32xf32, #tpu.memory_space<vmem>>, vector<1x8x32xf32>
    %1 = vector.shape_cast %0 : vector<1x8x32xf32> to vector<8x32xf32>
    %2 = arith.truncf %1 : vector<8x32xf32> to vector<8x32xbf16>
    %c0_2 = arith.constant 0 : index
    %c0_3 = arith.constant 0 : index
    %3 = vector.load %arg5[%c0_2, %c0_3] : memref<32x32xbf16, #tpu.memory_space<vmem>>, vector<32x32xbf16>
    %cst = arith.constant dense<0.000000e+00> : vector<8x32xf32>
    %4 = tpu.matmul %2, %3, %cst {dimension_numbers = #tpu.dot_dimension_numbers<[1], [0], [0], [1], [0, 0, 1, 1], [], []>} : vector<8x32xbf16>, vector<32x32xbf16>, vector<8x32xf32> -> vector<8x32xf32>
    %c0_4 = arith.constant 0 : index
    %c0_5 = arith.constant 0 : index
    %5 = vector.load %arg8[%c0_4, %c0_5] : memref<1x32xf32, #tpu.memory_space<vmem>>, vector<1x32xf32>
    %6 = vector.broadcast %5 : vector<1x32xf32> to vector<8x32xf32>
    %7 = arith.addf %4, %6 : vector<8x32xf32>
    %8 = arith.truncf %7 : vector<8x32xf32> to vector<8x32xbf16>
    %c0_6 = arith.constant 0 : index
    %c0_7 = arith.constant 0 : index
    %c0_8 = arith.constant 0 : index
    %9 = vector.load %arg11[%c0_6, %c0_7, %c0_8] : memref<1x8x32xbf16, #tpu.memory_space<vmem>>, vector<1x8x32xbf16>
    %10 = vector.shape_cast %9 : vector<1x8x32xbf16> to vector<8x32xbf16>
    %11 = vector.shape_cast %8 : vector<8x32xbf16> to vector<1x8x32xbf16>
    tpu.vector_store %arg11[%c0_6, %c0_7, %c0_8], %11 {strides = array<i32>} : memref<1x8x32xbf16, #tpu.memory_space<vmem>>, vector<1x8x32xbf16>,
    %c0_9 = arith.constant 0 : index
    %c0_10 = arith.constant 0 : index
    %c0_11 = arith.constant 0 : index
    %12 = vector.load %arg3[%c0_9, %c0_10, %c0_11] : memref<1x8x32xf32, #tpu.memory_space<vmem>>, vector<1x8x32xf32>
    %13 = vector.shape_cast %12 : vector<1x8x32xf32> to vector<8x32xf32>
    %14 = arith.truncf %13 : vector<8x32xf32> to vector<8x32xbf16>
    %c0_12 = arith.constant 0 : index
    %c0_13 = arith.constant 0 : index
    %15 = vector.load %arg6[%c0_12, %c0_13] : memref<32x32xbf16, #tpu.memory_space<vmem>>, vector<32x32xbf16>
    %cst_14 = arith.constant dense<0.000000e+00> : vector<8x32xf32>
    %16 = tpu.matmul %14, %15, %cst_14 {dimension_numbers = #tpu.dot_dimension_numbers<[1], [0], [0], [1], [0, 0, 1, 1], [], []>} : vector<8x32xbf16>, vector<32x32xbf16>, vector<8x32xf32> -> vector<8x32xf32>
    %c0_15 = arith.constant 0 : index
    %c0_16 = arith.constant 0 : index
    %17 = vector.load %arg9[%c0_15, %c0_16] : memref<1x32xf32, #tpu.memory_space<vmem>>, vector<1x32xf32>
    %18 = vector.broadcast %17 : vector<1x32xf32> to vector<8x32xf32>
    %19 = arith.addf %16, %18 : vector<8x32xf32>
    %20 = arith.truncf %19 : vector<8x32xf32> to vector<8x32xbf16>
    %c0_17 = arith.constant 0 : index
    %c0_18 = arith.constant 0 : index
    %c0_19 = arith.constant 0 : index
    %21 = vector.load %arg12[%c0_17, %c0_18, %c0_19] : memref<1x8x32xbf16, #tpu.memory_space<vmem>>, vector<1x8x32xbf16>
    %22 = vector.shape_cast %21 : vector<1x8x32xbf16> to vector<8x32xbf16>
    %23 = vector.shape_cast %20 : vector<8x32xbf16> to vector<1x8x32xbf16>
    tpu.vector_store %arg12[%c0_17, %c0_18, %c0_19], %23 {strides = array<i32>} : memref<1x8x32xbf16, #tpu.memory_space<vmem>>, vector<1x8x32xbf16>,
    %c0_20 = arith.constant 0 : index
    %c0_21 = arith.constant 0 : index
    %c0_22 = arith.constant 0 : index
    %24 = vector.load %arg4[%c0_20, %c0_21, %c0_22] : memref<1x8x32xf32, #tpu.memory_space<vmem>>, vector<1x8x32xf32>
    %25 = vector.shape_cast %24 : vector<1x8x32xf32> to vector<8x32xf32>
    %26 = arith.truncf %25 : vector<8x32xf32> to vector<8x32xbf16>
    %c0_23 = arith.constant 0 : index
    %c0_24 = arith.constant 0 : index
    %27 = vector.load %arg7[%c0_23, %c0_24] : memref<32x32xbf16, #tpu.memory_space<vmem>>, vector<32x32xbf16>
    %cst_25 = arith.constant dense<0.000000e+00> : vector<8x32xf32>
    %28 = tpu.matmul %26, %27, %cst_25 {dimension_numbers = #tpu.dot_dimension_numbers<[1], [0], [0], [1], [0, 0, 1, 1], [], []>} : vector<8x32xbf16>, vector<32x32xbf16>, vector<8x32xf32> -> vector<8x32xf32>
    %c0_26 = arith.constant 0 : index
    %c0_27 = arith.constant 0 : index
    %29 = vector.load %arg10[%c0_26, %c0_27] : memref<1x32xf32, #tpu.memory_space<vmem>>, vector<1x32xf32>
    %30 = vector.broadcast %29 : vector<1x32xf32> to vector<8x32xf32>
    %31 = arith.addf %28, %30 : vector<8x32xf32>
    %32 = arith.truncf %31 : vector<8x32xf32> to vector<8x32xbf16>
    %c0_28 = arith.constant 0 : index
    %c0_29 = arith.constant 0 : index
    %c0_30 = arith.constant 0 : index
    %33 = vector.load %arg13[%c0_28, %c0_29, %c0_30] : memref<1x8x32xbf16, #tpu.memory_space<vmem>>, vector<1x8x32xbf16>
    %34 = vector.shape_cast %33 : vector<1x8x32xbf16> to vector<8x32xbf16>
    %35 = vector.shape_cast %32 : vector<8x32xbf16> to vector<1x8x32xbf16>
    tpu.vector_store %arg13[%c0_28, %c0_29, %c0_30], %35 {strides = array<i32>} : memref<1x8x32xbf16, #tpu.memory_space<vmem>>, vector<1x8x32xbf16>,
    return
  }
  func.func @transform_0(%arg0: i32, %arg1: i32) -> (i32, i32, i32) {
    %c0_i32 = arith.constant 0 : i32
    %c0_i32_0 = arith.constant 0 : i32
    return %arg0, %arg1, %c0_i32 : i32, i32, i32
  }
  func.func @transform_1(%arg0: i32, %arg1: i32) -> (i32, i32, i32) {
    %c0_i32 = arith.constant 0 : i32
    %c0_i32_0 = arith.constant 0 : i32
    return %arg0, %arg1, %c0_i32 : i32, i32, i32
  }
  func.func @transform_2(%arg0: i32, %arg1: i32) -> (i32, i32, i32) {
    %c0_i32 = arith.constant 0 : i32
    %c0_i32_0 = arith.constant 0 : i32
    return %arg0, %arg1, %c0_i32 : i32, i32, i32
  }
  func.func @transform_3(%arg0: i32, %arg1: i32) -> (i32, i32) {
    %c0_i32 = arith.constant 0 : i32
    %c0_i32_0 = arith.constant 0 : i32
    %c0_i32_1 = arith.constant 0 : i32
    return %c0_i32, %c0_i32_0 : i32, i32
  }
  func.func @transform_4(%arg0: i32, %arg1: i32) -> (i32, i32) {
    %c0_i32 = arith.constant 0 : i32
    %c0_i32_0 = arith.constant 0 : i32
    %c0_i32_1 = arith.constant 0 : i32
    return %c0_i32, %c0_i32_0 : i32, i32
  }
  func.func @transform_5(%arg0: i32, %arg1: i32) -> (i32, i32) {
    %c0_i32 = arith.constant 0 : i32
    %c0_i32_0 = arith.constant 0 : i32
    %c0_i32_1 = arith.constant 0 : i32
    return %c0_i32, %c0_i32_0 : i32, i32
  }
  func.func @transform_6(%arg0: i32, %arg1: i32) -> (i32, i32) {
    %c0_i32 = arith.constant 0 : i32
    %c0_i32_0 = arith.constant 0 : i32
    %c0_i32_1 = arith.constant 0 : i32
    return %c0_i32, %c0_i32_0 : i32, i32
  }
  func.func @transform_7(%arg0: i32, %arg1: i32) -> (i32, i32) {
    %c0_i32 = arith.constant 0 : i32
    %c0_i32_0 = arith.constant 0 : i32
    %c0_i32_1 = arith.constant 0 : i32
    return %c0_i32, %c0_i32_0 : i32, i32
  }
  func.func @transform_8(%arg0: i32, %arg1: i32) -> (i32, i32) {
    %c0_i32 = arith.constant 0 : i32
    %c0_i32_0 = arith.constant 0 : i32
    %c0_i32_1 = arith.constant 0 : i32
    return %c0_i32, %c0_i32_0 : i32, i32
  }
  func.func @transform_9(%arg0: i32, %arg1: i32) -> (i32, i32, i32) {
    %c0_i32 = arith.constant 0 : i32
    %c0_i32_0 = arith.constant 0 : i32
    return %arg0, %arg1, %c0_i32 : i32, i32, i32
  }
  func.func @transform_10(%arg0: i32, %arg1: i32) -> (i32, i32, i32) {
    %c0_i32 = arith.constant 0 : i32
    %c0_i32_0 = arith.constant 0 : i32
    return %arg0, %arg1, %c0_i32 : i32, i32, i32
  }
  func.func @transform_11(%arg0: i32, %arg1: i32) -> (i32, i32, i32) {
    %c0_i32 = arith.constant 0 : i32
    %c0_i32_0 = arith.constant 0 : i32
    return %arg0, %arg1, %c0_i32 : i32, i32, i32
  }
}

</mosaic_0001>

<llo_original>
// kernel: tpu_custom_call.1
$region0: #{tpu_custom_call.1}
  #allocation0 [shape = 'u32[]', space=smem, size = 0x4, offset = 0x4, fixed_abs, tag = 'smem constant byte address 0x4 - core index']
  #allocation1 [shape = 'u32[144,128]{1,0:T(1,128)}', space=vmem, size = 0x12000, scoped, tag = 'internal scratch']
  %s0 = inlined_call_operand.hbm [shape: f32[2,8,32], index: 0, kind: input, shape index: {}]
  %s1 = inlined_call_operand.hbm [shape: f32[2,8,32], index: 1, kind: input, shape index: {}]
  %s2 = inlined_call_operand.hbm [shape: f32[2,8,32], index: 2, kind: input, shape index: {}]
  %s3 = inlined_call_operand.hbm [shape: bf16[32,32], index: 3, kind: input, shape index: {}]
  %s4 = inlined_call_operand.hbm [shape: bf16[32,32], index: 4, kind: input, shape index: {}]
  %s5 = inlined_call_operand.hbm [shape: bf16[32,32], index: 5, kind: input, shape index: {}]
  %s6 = inlined_call_operand.vmem [shape: f32[1,32], index: 6, kind: input, shape index: {}]
  %s7 = inlined_call_operand.vmem [shape: f32[1,32], index: 7, kind: input, shape index: {}]
  %s8 = inlined_call_operand.vmem [shape: f32[1,32], index: 8, kind: input, shape index: {}]
  %s9 = inlined_call_operand.hbm [shape: bf16[2,8,32], index: 9, kind: output, shape index: {0}]
  %s10 = inlined_call_operand.hbm [shape: bf16[2,8,32], index: 10, kind: output, shape index: {1}]
  %s11 = inlined_call_operand.hbm [shape: bf16[2,8,32], index: 11, kind: output, shape index: {2}]
  %12 = xla_tuple %s9, %s10, %s11
  %s13 = sld [smem:[#allocation0]]
  $region109: #{tpu_custom_call.1} parent=0
    _
  %s15 = ssub.s32 1, %s13
  %s16 = scalar_select 0, %s15, %s13
  $region1: #{tpu_custom_call.1} parent=0
    #allocation2 [shape = 'u8[8192]{0}', space=vmem, size = 0x2000, scoped, tag = 'input window, operand 0']
    #allocation3 [shape = 's32[2]{0}', space=sflag, size = 0x8, scoped, tag = 'scoped memory for tpu_custom_call.1']
    #allocation4 [shape = 's32[2]{0}', space=sflag, size = 0x8, scoped, tag = 'scoped memory for tpu_custom_call.1']
    #allocation5 [shape = 'u8[8192]{0}', space=vmem, size = 0x2000, scoped, tag = 'input window, operand 1']
    #allocation6 [shape = 's32[2]{0}', space=sflag, size = 0x8, scoped, tag = 'scoped memory for tpu_custom_call.1']
    #allocation7 [shape = 'u8[8192]{0}', space=vmem, size = 0x2000, scoped, tag = 'input window, operand 2']
    #allocation8 [shape = 'u8[8192]{0}', space=vmem, size = 0x2000, scoped, tag = 'input window, operand 3, single buffered']
    #allocation9 [shape = 's32[1]{0}', space=sflag, size = 0x4, scoped, tag = 'scoped memory for tpu_custom_call.1']
    #allocation10 [shape = 'u8[8192]{0}', space=vmem, size = 0x2000, scoped, tag = 'input window, operand 4, single buffered']
    #allocation11 [shape = 'u8[8192]{0}', space=vmem, size = 0x2000, scoped, tag = 'input window, operand 5, single buffered']
    #allocation12 [shape = 's32[1]{0}', space=sflag, size = 0x4, scoped, tag = 'scoped memory for tpu_custom_call.1']
    #allocation13 [shape = 'u8[4096]{0}', space=vmem, size = 0x1000, scoped, tag = 'output window, operand 0']
    #allocation14 [shape = 'u8[4096]{0}', space=vmem, size = 0x1000, scoped, tag = 'output window, operand 1']
    #allocation15 [shape = 's32[2]{0}', space=sflag, size = 0x8, scoped, tag = 'scoped memory for tpu_custom_call.1']
    #allocation16 [shape = 'u8[4096]{0}', space=vmem, size = 0x1000, scoped, tag = 'output window, operand 2']
    %17 = vsyncpa [#allocation3], 0
    %s18 = scalar_lea.sflag [#allocation3], 1
    %19 = vsyncpa %s18, 0
    %20 = vsyncpa [#allocation6], 0
    %s21 = scalar_lea.sflag [#allocation6], 1
    %22 = vsyncpa %s21, 0
    %23 = vsyncpa [#allocation9], 0
    %24 = vsyncpa [#allocation12], 0
    %25 = vsyncpa [#allocation4], 0
    %s26 = scalar_lea.sflag [#allocation4], 1
    %27 = vsyncpa %s26, 0
    %28 = vsyncpa [#allocation15], 0
    %s29 = scalar_lea.sflag [#allocation15], 1
    %30 = vsyncpa %s29, 0
    loop: start=0, step=1, limit=4
    $region2: #{tpu_custom_call.1} parent=1 // loop_pre_header
      _
    $region3: #{tpu_custom_call.1} parent=1 // loop_header
      %s32 = sphi 0, %s36
      %p33 = scmp.ge.s32.totalorder %s32, 4
      %s39 = sphi 0, %s51
      %s40 = sphi 0, %s47
      %s41 = sphi 0, %s39
      %s42 = sphi 0, %s40
      %s43 = sphi 0, %s41
      %s44 = sphi 0, %s42
      %s56 = sphi 0, %s58
      %s59 = sphi 0, %s56
      %s60 = sphi 0, %s59
      %s76 = sphi 0, %s60
      %s84 = sphi 0, %s86
      %s87 = sphi 0, %s84
      %s88 = sphi 0, %s87
      %s104 = sphi 0, %s88
      %s112 = sphi 0, %s114
      %s115 = sphi 0, %s112
      %s116 = sphi 0, %s115
      %s132 = sphi 0, %s116
      %s136 = sphi 0, %s136
      %s138 = sphi 0, %s136
      %s139 = sphi 0, %s138
      %s153 = sphi 0, %s139
      %s157 = sphi 0, %s157
      %s159 = sphi 0, %s157
      %s160 = sphi 0, %s159
      %s174 = sphi 0, %s160
      %s178 = sphi 0, %s178
      %s180 = sphi 0, %s178
      %s181 = sphi 0, %s180
      %s195 = sphi 0, %s181
      %s199 = sphi 0, %s199
      %s201 = sphi 0, %s199
      %s202 = sphi 0, %s201
      %s216 = sphi 0, %s202
      %s220 = sphi 0, %s220
      %s222 = sphi 0, %s220
      %s223 = sphi 0, %s222
      %s237 = sphi 0, %s223
      %s241 = sphi 0, %s241
      %s243 = sphi 0, %s241
      %s244 = sphi 0, %s243
      %s258 = sphi 0, %s244
      %s266 = sphi 0, %s268
      %s269 = sphi 0, %s266
      %s270 = sphi 0, %s269
      %s286 = sphi 0, %s270
      %s294 = sphi 0, %s296
      %s297 = sphi 0, %s294
      %s298 = sphi 0, %s297
      %s314 = sphi 0, %s298
      %s322 = sphi 0, %s324
      %s325 = sphi 0, %s322
      %s326 = sphi 0, %s325
      %s342 = sphi 0, %s326
    $region4: #{tpu_custom_call.1} parent=1 // loop_header_branch
      %35 = sbr.rel (%p33) target = $region8
    $region5: #{tpu_custom_call.1} parent=1 // loop_body
      %s37 = ssub.s32 %s32, 1
      %s38 = ssub.s32 %s32, 2
      %s45 = sadd.s32 1, %s40
      %p46 = scmp.ge.s32.totalorder %s45, 1
      %s47 = scalar_select %p46, 0, %s45
      %s48 = sadd.s32 1, %s39
      %s49 = scalar_select %p46, %s48, %s39
      %p50 = scmp.ge.s32.totalorder %s49, 2
      %s51 = scalar_select %p50, 0, %s49
      %s52 = ssub.s32 %s39, %s51
      %s53 = ssub.s32 %s40, %s47
      %s54 = sor.u32 %s52, %s53
      %p55 = scmp.eq.s32.totalorder %s54, 0
      %s57 = sadd.s32 %s56, 1
      %s58 = scalar_select %p55, %s56, %s57
      %p61 = pneg %p55
      %p62 = scmp.eq.s32.totalorder %s32, 1
      %p63 = por %p61, %p62
      %p64 = scmp.ne.s32.totalorder %s56, %s59
      %p65 = scmp.eq.s32.totalorder %s32, 0
      %p66 = por %p64, %p65
      %p67 = scmp.ne.s32.totalorder %s56, %s59
      %p68 = scmp.eq.s32.totalorder %s37, 1
      %p69 = por %p67, %p68
      %p70 = scmp.ne.s32.totalorder %s59, %s60
      %p71 = scmp.eq.s32.totalorder %s37, 0
      %p72 = por %p70, %p71
      %p73 = scmp.ne.s32.totalorder %s59, %s60
      %p74 = scmp.eq.s32.totalorder %s38, 1
      %p75 = por %p73, %p74
      %p77 = scmp.ne.s32.totalorder %s60, %s76
      %p78 = scmp.eq.s32.totalorder %s38, 0
      %p79 = por %p77, %p78
      %s80 = ssub.s32 %s39, %s51
      %s81 = ssub.s32 %s40, %s47
      %s82 = sor.u32 %s80, %s81
      %p83 = scmp.eq.s32.totalorder %s82, 0
      %s85 = sadd.s32 %s84, 1
      %s86 = scalar_select %p83, %s84, %s85
      %p89 = pneg %p83
      %p90 = scmp.eq.s32.totalorder %s32, 1
      %p91 = por %p89, %p90
      %p92 = scmp.ne.s32.totalorder %s84, %s87
      %p93 = scmp.eq.s32.totalorder %s32, 0
      %p94 = por %p92, %p93
      %p95 = scmp.ne.s32.totalorder %s84, %s87
      %p96 = scmp.eq.s32.totalorder %s37, 1
      %p97 = por %p95, %p96
      %p98 = scmp.ne.s32.totalorder %s87, %s88
      %p99 = scmp.eq.s32.totalorder %s37, 0
      %p100 = por %p98, %p99
      %p101 = scmp.ne.s32.totalorder %s87, %s88
      %p102 = scmp.eq.s32.totalorder %s38, 1
      %p103 = por %p101, %p102
      %p105 = scmp.ne.s32.totalorder %s88, %s104
      %p106 = scmp.eq.s32.totalorder %s38, 0
      %p107 = por %p105, %p106
      %s108 = ssub.s32 %s39, %s51
      %s109 = ssub.s32 %s40, %s47
      %s110 = sor.u32 %s108, %s109
      %p111 = scmp.eq.s32.totalorder %s110, 0
      %s113 = sadd.s32 %s112, 1
      %s114 = scalar_select %p111, %s112, %s113
      %p117 = pneg %p111
      %p118 = scmp.eq.s32.totalorder %s32, 1
      %p119 = por %p117, %p118
      %p120 = scmp.ne.s32.totalorder %s112, %s115
      %p121 = scmp.eq.s32.totalorder %s32, 0
      %p122 = por %p120, %p121
      %p123 = scmp.ne.s32.totalorder %s112, %s115
      %p124 = scmp.eq.s32.totalorder %s37, 1
      %p125 = por %p123, %p124
      %p126 = scmp.ne.s32.totalorder %s115, %s116
      %p127 = scmp.eq.s32.totalorder %s37, 0
      %p128 = por %p126, %p127
      %p129 = scmp.ne.s32.totalorder %s115, %s116
      %p130 = scmp.eq.s32.totalorder %s38, 1
      %p131 = por %p129, %p130
      %p133 = scmp.ne.s32.totalorder %s116, %s132
      %p134 = scmp.eq.s32.totalorder %s38, 0
      %p135 = por %p133, %p134
      %s137 = sadd.s32 %s136, 1
      %p140 = scmp.eq.s32.totalorder %s32, 1
      %p141 = scmp.ne.s32.totalorder %s136, %s138
      %p142 = scmp.eq.s32.totalorder %s32, 0
      %p143 = por %p141, %p142
      %p144 = scmp.ne.s32.totalorder %s136, %s138
      %p145 = scmp.eq.s32.totalorder %s37, 1
      %p146 = por %p144, %p145
      %p147 = scmp.ne.s32.totalorder %s138, %s139
      %p148 = scmp.eq.s32.totalorder %s37, 0
      %p149 = por %p147, %p148
      %p150 = scmp.ne.s32.totalorder %s138, %s139
      %p151 = scmp.eq.s32.totalorder %s38, 1
      %p152 = por %p150, %p151
      %p154 = scmp.ne.s32.totalorder %s139, %s153
      %p155 = scmp.eq.s32.totalorder %s38, 0
      %p156 = por %p154, %p155
      %s158 = sadd.s32 %s157, 1
      %p161 = scmp.eq.s32.totalorder %s32, 1
      %p162 = scmp.ne.s32.totalorder %s157, %s159
      %p163 = scmp.eq.s32.totalorder %s32, 0
      %p164 = por %p162, %p163
      %p165 = scmp.ne.s32.totalorder %s157, %s159
      %p166 = scmp.eq.s32.totalorder %s37, 1
      %p167 = por %p165, %p166
      %p168 = scmp.ne.s32.totalorder %s159, %s160
      %p169 = scmp.eq.s32.totalorder %s37, 0
      %p170 = por %p168, %p169
      %p171 = scmp.ne.s32.totalorder %s159, %s160
      %p172 = scmp.eq.s32.totalorder %s38, 1
      %p173 = por %p171, %p172
      %p175 = scmp.ne.s32.totalorder %s160, %s174
      %p176 = scmp.eq.s32.totalorder %s38, 0
      %p177 = por %p175, %p176
      %s179 = sadd.s32 %s178, 1
      %p182 = scmp.eq.s32.totalorder %s32, 1
      %p183 = scmp.ne.s32.totalorder %s178, %s180
      %p184 = scmp.eq.s32.totalorder %s32, 0
      %p185 = por %p183, %p184
      %p186 = scmp.ne.s32.totalorder %s178, %s180
      %p187 = scmp.eq.s32.totalorder %s37, 1
      %p188 = por %p186, %p187
      %p189 = scmp.ne.s32.totalorder %s180, %s181
      %p190 = scmp.eq.s32.totalorder %s37, 0
      %p191 = por %p189, %p190
      %p192 = scmp.ne.s32.totalorder %s180, %s181
      %p193 = scmp.eq.s32.totalorder %s38, 1
      %p194 = por %p192, %p193
      %p196 = scmp.ne.s32.totalorder %s181, %s195
      %p197 = scmp.eq.s32.totalorder %s38, 0
      %p198 = por %p196, %p197
      %s200 = sadd.s32 %s199, 1
      %p203 = scmp.eq.s32.totalorder %s32, 1
      %p204 = scmp.ne.s32.totalorder %s199, %s201
      %p205 = scmp.eq.s32.totalorder %s32, 0
      %p206 = por %p204, %p205
      %p207 = scmp.ne.s32.totalorder %s199, %s201
      %p208 = scmp.eq.s32.totalorder %s37, 1
      %p209 = por %p207, %p208
      %p210 = scmp.ne.s32.totalorder %s201, %s202
      %p211 = scmp.eq.s32.totalorder %s37, 0
      %p212 = por %p210, %p211
      %p213 = scmp.ne.s32.totalorder %s201, %s202
      %p214 = scmp.eq.s32.totalorder %s38, 1
      %p215 = por %p213, %p214
      %p217 = scmp.ne.s32.totalorder %s202, %s216
      %p218 = scmp.eq.s32.totalorder %s38, 0
      %p219 = por %p217, %p218
      %s221 = sadd.s32 %s220, 1
      %p224 = scmp.eq.s32.totalorder %s32, 1
      %p225 = scmp.ne.s32.totalorder %s220, %s222
      %p226 = scmp.eq.s32.totalorder %s32, 0
      %p227 = por %p225, %p226
      %p228 = scmp.ne.s32.totalorder %s220, %s222
      %p229 = scmp.eq.s32.totalorder %s37, 1
      %p230 = por %p228, %p229
      %p231 = scmp.ne.s32.totalorder %s222, %s223
      %p232 = scmp.eq.s32.totalorder %s37, 0
      %p233 = por %p231, %p232
      %p234 = scmp.ne.s32.totalorder %s222, %s223
      %p235 = scmp.eq.s32.totalorder %s38, 1
      %p236 = por %p234, %p235
      %p238 = scmp.ne.s32.totalorder %s223, %s237
      %p239 = scmp.eq.s32.totalorder %s38, 0
      %p240 = por %p238, %p239
      %s242 = sadd.s32 %s241, 1
      %p245 = scmp.eq.s32.totalorder %s32, 1
      %p246 = scmp.ne.s32.totalorder %s241, %s243
      %p247 = scmp.eq.s32.totalorder %s32, 0
      %p248 = por %p246, %p247
      %p249 = scmp.ne.s32.totalorder %s241, %s243
      %p250 = scmp.eq.s32.totalorder %s37, 1
      %p251 = por %p249, %p250
      %p252 = scmp.ne.s32.totalorder %s243, %s244
      %p253 = scmp.eq.s32.totalorder %s37, 0
      %p254 = por %p252, %p253
      %p255 = scmp.ne.s32.totalorder %s243, %s244
      %p256 = scmp.eq.s32.totalorder %s38, 1
      %p257 = por %p255, %p256
      %p259 = scmp.ne.s32.totalorder %s244, %s258
      %p260 = scmp.eq.s32.totalorder %s38, 0
      %p261 = por %p259, %p260
      %s262 = ssub.s32 %s39, %s51
      %s263 = ssub.s32 %s40, %s47
      %s264 = sor.u32 %s262, %s263
      %p265 = scmp.eq.s32.totalorder %s264, 0
      %s267 = sadd.s32 %s266, 1
      %s268 = scalar_select %p265, %s266, %s267
      %p271 = pneg %p265
      %p272 = scmp.eq.s32.totalorder %s32, 1
      %p273 = por %p271, %p272
      %p274 = scmp.ne.s32.totalorder %s266, %s269
      %p275 = scmp.eq.s32.totalorder %s32, 0
      %p276 = por %p274, %p275
      %p277 = scmp.ne.s32.totalorder %s266, %s269
      %p278 = scmp.eq.s32.totalorder %s37, 1
      %p279 = por %p277, %p278
      %p280 = scmp.ne.s32.totalorder %s269, %s270
      %p281 = scmp.eq.s32.totalorder %s37, 0
      %p282 = por %p280, %p281
      %p283 = scmp.ne.s32.totalorder %s269, %s270
      %p284 = scmp.eq.s32.totalorder %s38, 1
      %p285 = por %p283, %p284
      %p287 = scmp.ne.s32.totalorder %s270, %s286
      %p288 = scmp.eq.s32.totalorder %s38, 0
      %p289 = por %p287, %p288
      %s290 = ssub.s32 %s39, %s51
      %s291 = ssub.s32 %s40, %s47
      %s292 = sor.u32 %s290, %s291
      %p293 = scmp.eq.s32.totalorder %s292, 0
      %s295 = sadd.s32 %s294, 1
      %s296 = scalar_select %p293, %s294, %s295
      %p299 = pneg %p293
      %p300 = scmp.eq.s32.totalorder %s32, 1
      %p301 = por %p299, %p300
      %p302 = scmp.ne.s32.totalorder %s294, %s297
      %p303 = scmp.eq.s32.totalorder %s32, 0
      %p304 = por %p302, %p303
      %p305 = scmp.ne.s32.totalorder %s294, %s297
      %p306 = scmp.eq.s32.totalorder %s37, 1
      %p307 = por %p305, %p306
      %p308 = scmp.ne.s32.totalorder %s297, %s298
      %p309 = scmp.eq.s32.totalorder %s37, 0
      %p310 = por %p308, %p309
      %p311 = scmp.ne.s32.totalorder %s297, %s298
      %p312 = scmp.eq.s32.totalorder %s38, 1
      %p313 = por %p311, %p312
      %p315 = scmp.ne.s32.totalorder %s298, %s314
      %p316 = scmp.eq.s32.totalorder %s38, 0
      %p317 = por %p315, %p316
      %s318 = ssub.s32 %s39, %s51
      %s319 = ssub.s32 %s40, %s47
      %s320 = sor.u32 %s318, %s319
      %p321 = scmp.eq.s32.totalorder %s320, 0
      %s323 = sadd.s32 %s322, 1
      %s324 = scalar_select %p321, %s322, %s323
      %p327 = pneg %p321
      %p328 = scmp.eq.s32.totalorder %s32, 1
      %p329 = por %p327, %p328
      %p330 = scmp.ne.s32.totalorder %s322, %s325
      %p331 = scmp.eq.s32.totalorder %s32, 0
      %p332 = por %p330, %p331
      %p333 = scmp.ne.s32.totalorder %s322, %s325
      %p334 = scmp.eq.s32.totalorder %s37, 1
      %p335 = por %p333, %p334
      %p336 = scmp.ne.s32.totalorder %s325, %s326
      %p337 = scmp.eq.s32.totalorder %s37, 0
      %p338 = por %p336, %p337
      %p339 = scmp.ne.s32.totalorder %s325, %s326
      %p340 = scmp.eq.s32.totalorder %s38, 1
      %p341 = por %p339, %p340
      %p343 = scmp.ne.s32.totalorder %s326, %s342
      %p344 = scmp.eq.s32.totalorder %s38, 0
      %p345 = por %p343, %p344
      %p346 = scmp.le.s32.totalorder 1, %s32
      %p347 = scmp.lt.s32.totalorder %s32, 3
      %p348 = pnand %p346, %p347
      %p349 = pneg %p348
      // Predicated region
      $region9: #{tpu_custom_call.1} parent=5 // pred_check
        _
      $region10: #{tpu_custom_call.1} parent=5 // pred_check_branch
        %351 = sbr.rel (%p348) target = $region12
      $region11: #{tpu_custom_call.1} parent=5 // pred_region
        %s352 = ssub.s32 %s32, 1
        // Predicated region
        $region13: #{tpu_custom_call.1} parent=11 // pred_check
          %p353 = pneg %p149
        $region14: #{tpu_custom_call.1} parent=11 // pred_check_branch
          %355 = sbr.rel (%p353) target = $region16
        $region15: #{tpu_custom_call.1} parent=11 // pred_region
          %s357 = ssub.s32 256, 256
          %358 = vsyncadd [#allocation9], %s357
          %s359 = sshll.u32 [#allocation8], 4
          %s360 = int_to_ptr.vmem [resolvable:$true] %s359
          %365 = dma.hbm_to_vmem [thread:$0]  %s3, 256, %s360, [#allocation9], 64, 64, 4
        $region16: #{tpu_custom_call.1} parent=11 // pred_fallthru
          _
        // Predicated region
        $region17: #{tpu_custom_call.1} parent=11 // pred_check
          %p366 = pneg %p170
        $region18: #{tpu_custom_call.1} parent=11 // pred_check_branch
          %368 = sbr.rel (%p366) target = $region20
        $region19: #{tpu_custom_call.1} parent=11 // pred_region
          %s370 = ssub.s32 256, 256
          %371 = vsyncadd [#allocation9], %s370
          %s372 = sshll.u32 [#allocation10], 4
          %s373 = int_to_ptr.vmem [resolvable:$true] %s372
          %378 = dma.hbm_to_vmem [thread:$0]  %s4, 256, %s373, [#allocation9], 64, 64, 4
        $region20: #{tpu_custom_call.1} parent=11 // pred_fallthru
          _
        // Predicated region
        $region21: #{tpu_custom_call.1} parent=11 // pred_check
          %p379 = pneg %p191
        $region22: #{tpu_custom_call.1} parent=11 // pred_check_branch
          %381 = sbr.rel (%p379) target = $region24
        $region23: #{tpu_custom_call.1} parent=11 // pred_region
          %s383 = ssub.s32 256, 256
          %384 = vsyncadd [#allocation12], %s383
          %s385 = sshll.u32 [#allocation11], 4
          %s386 = int_to_ptr.vmem [resolvable:$true] %s385
          %391 = dma.hbm_to_vmem [thread:$0]  %s5, 256, %s386, [#allocation12], 64, 64, 4
        $region24: #{tpu_custom_call.1} parent=11 // pred_fallthru
          _
        // Predicated region
        $region25: #{tpu_custom_call.1} parent=11 // pred_check
          %p392 = pneg %p212
        $region26: #{tpu_custom_call.1} parent=11 // pred_check_branch
          %394 = sbr.rel (%p392) target = $region28
        $region27: #{tpu_custom_call.1} parent=11 // pred_region
          _
        $region28: #{tpu_custom_call.1} parent=11 // pred_fallthru
          _
        // Predicated region
        $region29: #{tpu_custom_call.1} parent=11 // pred_check
          %p395 = pneg %p233
        $region30: #{tpu_custom_call.1} parent=11 // pred_check_branch
          %397 = sbr.rel (%p395) target = $region32
        $region31: #{tpu_custom_call.1} parent=11 // pred_region
          _
        $region32: #{tpu_custom_call.1} parent=11 // pred_fallthru
          _
        // Predicated region
        $region33: #{tpu_custom_call.1} parent=11 // pred_check
          %p398 = pneg %p254
        $region34: #{tpu_custom_call.1} parent=11 // pred_check_branch
          %400 = sbr.rel (%p398) target = $region36
        $region35: #{tpu_custom_call.1} parent=11 // pred_region
          _
        $region36: #{tpu_custom_call.1} parent=11 // pred_fallthru
          _
      $region12: #{tpu_custom_call.1} parent=5 // pred_fallthru
        _
      %p401 = scmp.lt.s32.totalorder %s32, 2
      // Predicated region
      $region37: #{tpu_custom_call.1} parent=5 // pred_check
        %p402 = pneg %p401
      $region38: #{tpu_custom_call.1} parent=5 // pred_check_branch
        %404 = sbr.rel (%p402) target = $region40
      $region39: #{tpu_custom_call.1} parent=5 // pred_region
        // Predicated region
        $region41: #{tpu_custom_call.1} parent=39 // pred_check
          %p405 = pneg %p66
        $region42: #{tpu_custom_call.1} parent=39 // pred_check_branch
          %407 = sbr.rel (%p405) target = $region44
        $region43: #{tpu_custom_call.1} parent=39 // pred_region
          %s408 = sand.u32 %s56, 1
          %s409 = scalar_lea.sflag [#allocation3], %s408
          %s410 = sand.u32 %s56, 1
          %s411 = smul.addr %s410, 8
          %s412 = scalar_lea.vmem [#allocation2], %s411
          %s414 = ssub.s32 128, 128
          %415 = vsyncadd %s409, %s414
          %s416 = sadd.s32 %s40, %s39
          %s417 = smul.addr %s416, 128
          %s418 = scalar_lea.hbm %s0, %s417
          %s420 = sshll.u32 %s412, 4
          %s421 = int_to_ptr.vmem [resolvable:$true] %s420
          %423 = dma.hbm_to_vmem [thread:$0]  %s418, 128, %s421, %s409
        $region44: #{tpu_custom_call.1} parent=39 // pred_fallthru
          _
        // Predicated region
        $region45: #{tpu_custom_call.1} parent=39 // pred_check
          %p424 = pneg %p94
        $region46: #{tpu_custom_call.1} parent=39 // pred_check_branch
          %426 = sbr.rel (%p424) target = $region48
        $region47: #{tpu_custom_call.1} parent=39 // pred_region
          %s427 = sand.u32 %s32, 1
          %s428 = scalar_lea.sflag [#allocation6], %s427
          %s429 = sand.u32 %s84, 1
          %s430 = smul.addr %s429, 8
          %s431 = scalar_lea.vmem [#allocation5], %s430
          %s433 = ssub.s32 128, 128
          %434 = vsyncadd %s428, %s433
          %s435 = sadd.s32 %s40, %s39
          %s436 = smul.addr %s435, 128
          %s437 = scalar_lea.hbm %s1, %s436
          %s439 = sshll.u32 %s431, 4
          %s440 = int_to_ptr.vmem [resolvable:$true] %s439
          %442 = dma.hbm_to_vmem [thread:$0]  %s437, 128, %s440, %s428
        $region48: #{tpu_custom_call.1} parent=39 // pred_fallthru
          _
        // Predicated region
        $region49: #{tpu_custom_call.1} parent=39 // pred_check
          %p443 = pneg %p122
        $region50: #{tpu_custom_call.1} parent=39 // pred_check_branch
          %445 = sbr.rel (%p443) target = $region52
        $region51: #{tpu_custom_call.1} parent=39 // pred_region
          %s446 = sand.u32 %s32, 1
          %s447 = scalar_lea.sflag [#allocation6], %s446
          %s448 = sand.u32 %s112, 1
          %s449 = smul.addr %s448, 8
          %s450 = scalar_lea.vmem [#allocation7], %s449
          %s452 = ssub.s32 128, 128
          %453 = vsyncadd %s447, %s452
          %s454 = sadd.s32 %s40, %s39
          %s455 = smul.addr %s454, 128
          %s456 = scalar_lea.hbm %s2, %s455
          %s458 = sshll.u32 %s450, 4
          %s459 = int_to_ptr.vmem [resolvable:$true] %s458
          %461 = dma.hbm_to_vmem [thread:$0]  %s456, 128, %s459, %s447
        $region52: #{tpu_custom_call.1} parent=39 // pred_fallthru
          _
      $region40: #{tpu_custom_call.1} parent=5 // pred_fallthru
        _
      %p462 = scmp.le.s32.totalorder 1, %s32
      %p463 = scmp.lt.s32.totalorder %s32, 3
      %p464 = pnand %p462, %p463
      %p465 = pneg %p464
      // Predicated region
      $region53: #{tpu_custom_call.1} parent=5 // pred_check
        _
      $region54: #{tpu_custom_call.1} parent=5 // pred_check_branch
        %467 = sbr.rel (%p464) target = $region56
      $region55: #{tpu_custom_call.1} parent=5 // pred_region
        %s468 = ssub.s32 %s32, 1
        %s469 = sand.u32 %s59, 1
        %s470 = scalar_lea.sflag [#allocation3], %s469
        %s471 = sand.u32 %s59, 1
        %s472 = smul.addr %s471, 8
        %s473 = scalar_lea.vmem [#allocation2], %s472
        // Predicated region
        $region57: #{tpu_custom_call.1} parent=55 // pred_check
          %p474 = pneg %p72
        $region58: #{tpu_custom_call.1} parent=55 // pred_check_branch
          %476 = sbr.rel (%p474) target = $region60
        $region59: #{tpu_custom_call.1} parent=55 // pred_region
          %477 = dma.done %s470, 128
        $region60: #{tpu_custom_call.1} parent=55 // pred_fallthru
          _
        %s478 = sand.u32 %s37, 1
        %s479 = scalar_lea.sflag [#allocation6], %s478
        %s480 = sand.u32 %s87, 1
        %s481 = smul.addr %s480, 8
        %s482 = scalar_lea.vmem [#allocation5], %s481
        // Predicated region
        $region61: #{tpu_custom_call.1} parent=55 // pred_check
          %p483 = pneg %p100
        $region62: #{tpu_custom_call.1} parent=55 // pred_check_branch
          %485 = sbr.rel (%p483) target = $region64
        $region63: #{tpu_custom_call.1} parent=55 // pred_region
          %486 = dma.done %s479, 128
        $region64: #{tpu_custom_call.1} parent=55 // pred_fallthru
          _
        %s487 = sand.u32 %s37, 1
        %s488 = scalar_lea.sflag [#allocation6], %s487
        %s489 = sand.u32 %s115, 1
        %s490 = smul.addr %s489, 8
        %s491 = scalar_lea.vmem [#allocation7], %s490
        // Predicated region
        $region65: #{tpu_custom_call.1} parent=55 // pred_check
          %p492 = pneg %p128
        $region66: #{tpu_custom_call.1} parent=55 // pred_check_branch
          %494 = sbr.rel (%p492) target = $region68
        $region67: #{tpu_custom_call.1} parent=55 // pred_region
          %495 = dma.done %s488, 128
        $region68: #{tpu_custom_call.1} parent=55 // pred_fallthru
          _
        // Predicated region
        $region69: #{tpu_custom_call.1} parent=55 // pred_check
          %p496 = pneg %p149
        $region70: #{tpu_custom_call.1} parent=55 // pred_check_branch
          %498 = sbr.rel (%p496) target = $region72
        $region71: #{tpu_custom_call.1} parent=55 // pred_region
          %499 = dma.done [#allocation9], 256
        $region72: #{tpu_custom_call.1} parent=55 // pred_fallthru
          _
        // Predicated region
        $region73: #{tpu_custom_call.1} parent=55 // pred_check
          %p500 = pneg %p170
        $region74: #{tpu_custom_call.1} parent=55 // pred_check_branch
          %502 = sbr.rel (%p500) target = $region76
        $region75: #{tpu_custom_call.1} parent=55 // pred_region
          %503 = dma.done [#allocation9], 256
        $region76: #{tpu_custom_call.1} parent=55 // pred_fallthru
          _
        // Predicated region
        $region77: #{tpu_custom_call.1} parent=55 // pred_check
          %p504 = pneg %p191
        $region78: #{tpu_custom_call.1} parent=55 // pred_check_branch
          %506 = sbr.rel (%p504) target = $region80
        $region79: #{tpu_custom_call.1} parent=55 // pred_region
          %507 = dma.done [#allocation12], 256
        $region80: #{tpu_custom_call.1} parent=55 // pred_fallthru
          _
        %s508 = sand.u32 %s59, 1
        %s509 = scalar_lea.sflag [#allocation3], %s508
        %s510 = sand.u32 %s59, 1
        %s511 = smul.addr %s510, 8
        %s512 = scalar_lea.vmem [#allocation2], %s511
        %p513 = pneg %p72
        %p514 = pneg %p69
        %s515 = sand.u32 %s37, 1
        %s516 = scalar_lea.sflag [#allocation6], %s515
        %s517 = sand.u32 %s87, 1
        %s518 = smul.addr %s517, 8
        %s519 = scalar_lea.vmem [#allocation5], %s518
        %p520 = pneg %p100
        %p521 = pneg %p97
        %s522 = sand.u32 %s37, 1
        %s523 = scalar_lea.sflag [#allocation6], %s522
        %s524 = sand.u32 %s115, 1
        %s525 = smul.addr %s524, 8
        %s526 = scalar_lea.vmem [#allocation7], %s525
        %p527 = pneg %p128
        %p528 = pneg %p125
        %p529 = pneg %p149
        %p530 = pneg %p146
        %p531 = pneg %p170
        %p532 = pneg %p167
        %p533 = pneg %p191
        %p534 = pneg %p188
        %p535 = pneg %p212
        %p536 = pneg %p209
        %p537 = pneg %p233
        %p538 = pneg %p230
        %p539 = pneg %p254
        %p540 = pneg %p251
        %p541 = pneg %p282
        %p542 = pneg %p279
        %s543 = sand.u32 %s269, 1
        %s544 = scalar_lea.sflag [#allocation4], %s543
        %s545 = sand.u32 %s269, 1
        %s546 = smul.addr %s545, 4
        %s547 = scalar_lea.vmem [#allocation13], %s546
        %p548 = pneg %p310
        %p549 = pneg %p307
        %s550 = sand.u32 %s37, 1
        %s551 = scalar_lea.sflag [#allocation15], %s550
        %s552 = sand.u32 %s297, 1
        %s553 = smul.addr %s552, 4
        %s554 = scalar_lea.vmem [#allocation14], %s553
        %p555 = pneg %p338
        %p556 = pneg %p335
        %s557 = sand.u32 %s37, 1
        %s558 = scalar_lea.sflag [#allocation15], %s557
        %s559 = sand.u32 %s325, 1
        %s560 = smul.addr %s559, 4
        %s561 = scalar_lea.vmem [#allocation16], %s560
        %v563 = vld [vmem:[%s473] sm:$0xff]
        %v564 = vpack.c.bf16 %v563, %v563
        %v565 = vld [vmem:[#allocation8] sm:$0xf]
        %v566 = vld [vmem:[#allocation8 + $0x4] sm:$0xf]
        %v567 = vld [vmem:[#allocation8 + $0x8] sm:$0xf]
        %v568 = vld [vmem:[#allocation8 + $0xc] sm:$0xf]
        %v569 = vld [vmem:[%s6] sm:$0x1]
        %v571 = vlaneseq
        %v572 = vshrl.u32 %v571, 7
        %v573 = vsub.s32 0, %v572
        %v574 = vrot.slane %v569, %v573
        %v580 = vunpack.c.l.b16 %v565
        %v581 = vunpack.c.l.b16 %v566
        %v582 = vunpack.c.l.b16 %v567
        %v583 = vunpack.c.l.b16 %v568
        %v584 = vpack.c.b16 %v581, %v580
        %v585 = vpack.c.b16 %v583, %v582
        %vm588 = vcmask 261120
        %v590 = vsel %vm588, %v564, 0
        %592 = vmatprep.subr.bf16.mxu0 0
        %593 = vmatpush1.bf16.msra.mxu0 0
        %594 = vmatprep.subr.bf16.mxu0 0
        %595 = vmatpush1.bf16.msra.mxu0 0
        %596 = vmatprep.subr.bf16.mxu0 0
        %597 = vmatpush1.bf16.msra.mxu0 0
        %598 = vmatprep.subr.bf16.mxu0 0
        %599 = vmatpush1.bf16.msra.mxu0 0
        %600 = vmatprep.subr.bf16.mxu0 0
        %601 = vmatpush1.bf16.msra.mxu0 0
        %602 = vmatprep.subr.bf16.mxu0 0
        %603 = vmatpush1.bf16.msra.mxu0 0
        %604 = vmatprep.subr.bf16.mxu0 0
        %605 = vmatpush1.bf16.msra.mxu0 %v585
        %606 = vmatprep.subr.bf16.mxu0 0
        %607 = vmatpush1.bf16.msra.mxu0 %v584
        %608 = vmatprep.subr.bf16.mxu0 0
        %609 = vmatpush2.bf16.msra.mxu0 0
        %610 = vmatprep.subr.bf16.mxu0 0
        %611 = vmatpush2.bf16.msra.mxu0 0
        %612 = vmatprep.subr.bf16.mxu0 0
        %613 = vmatpush2.bf16.msra.mxu0 0
        %614 = vmatprep.subr.bf16.mxu0 0
        %615 = vmatpush2.bf16.msra.mxu0 0
        %616 = vmatprep.subr.bf16.mxu0 0
        %617 = vmatpush2.bf16.msra.mxu0 0
        %618 = vmatprep.subr.bf16.mxu0 0
        %619 = vmatpush2.bf16.msra.mxu0 0
        %620 = vmatprep.subr.bf16.mxu0 0
        %621 = vmatpush2.bf16.msra.mxu0 0
        %622 = vmatprep.subr.bf16.mxu0 0
        %623 = vmatpush2.bf16.msra.mxu0 0
        %624 = vmatprep.mubr.bf16.mxu0 0
        %625 = vmatmul.mubr.bf16.gmra.mxu0 %v590
        %v626 = vpop.f32.mrf.mxu0
        %v627 = vadd.f32 %v574, %v626
        %v628 = vpop.f32.mrf.mxu0
        %v629 = vpop.f32.mrf.mxu0
        %v630 = vpop.f32.mrf.mxu0
        %631 = vdwg.mxu0
        %v632 = vpack.c.bf16 %v627, %v627
        %vm633 = vcmask 257024
        %634 = vst.msk [vmem:[%s547] sm:$0xf] %vm633, %v632
        %v635 = vld [vmem:[%s482] sm:$0xff]
        %v636 = vpack.c.bf16 %v635, %v635
        %v637 = vld [vmem:[#allocation10] sm:$0xf]
        %v638 = vld [vmem:[#allocation10 + $0x4] sm:$0xf]
        %v639 = vld [vmem:[#allocation10 + $0x8] sm:$0xf]
        %v640 = vld [vmem:[#allocation10 + $0xc] sm:$0xf]
        %v641 = vld [vmem:[%s7] sm:$0x1]
        %v643 = vlaneseq
        %v644 = vshrl.u32 %v643, 7
        %v645 = vsub.s32 0, %v644
        %v646 = vrot.slane %v641, %v645
        %v652 = vunpack.c.l.b16 %v637
        %v653 = vunpack.c.l.b16 %v638
        %v654 = vunpack.c.l.b16 %v639
        %v655 = vunpack.c.l.b16 %v640
        %v656 = vpack.c.b16 %v653, %v652
        %v657 = vpack.c.b16 %v655, %v654
        %v661 = vsel %vm588, %v636, 0
        %663 = vmatprep.subr.bf16.mxu0 0
        %664 = vmatpush1.bf16.msra.mxu0 0
        %665 = vmatprep.subr.bf16.mxu0 0
        %666 = vmatpush1.bf16.msra.mxu0 0
        %667 = vmatprep.subr.bf16.mxu0 0
        %668 = vmatpush1.bf16.msra.mxu0 0
        %669 = vmatprep.subr.bf16.mxu0 0
        %670 = vmatpush1.bf16.msra.mxu0 0
        %671 = vmatprep.subr.bf16.mxu0 0
        %672 = vmatpush1.bf16.msra.mxu0 0
        %673 = vmatprep.subr.bf16.mxu0 0
        %674 = vmatpush1.bf16.msra.mxu0 0
        %675 = vmatprep.subr.bf16.mxu0 0
        %676 = vmatpush1.bf16.msra.mxu0 %v657
        %677 = vmatprep.subr.bf16.mxu0 0
        %678 = vmatpush1.bf16.msra.mxu0 %v656
        %679 = vmatprep.subr.bf16.mxu0 0
        %680 = vmatpush2.bf16.msra.mxu0 0
        %681 = vmatprep.subr.bf16.mxu0 0
        %682 = vmatpush2.bf16.msra.mxu0 0
        %683 = vmatprep.subr.bf16.mxu0 0
        %684 = vmatpush2.bf16.msra.mxu0 0
        %685 = vmatprep.subr.bf16.mxu0 0
        %686 = vmatpush2.bf16.msra.mxu0 0
        %687 = vmatprep.subr.bf16.mxu0 0
        %688 = vmatpush2.bf16.msra.mxu0 0
        %689 = vmatprep.subr.bf16.mxu0 0
        %690 = vmatpush2.bf16.msra.mxu0 0
        %691 = vmatprep.subr.bf16.mxu0 0
        %692 = vmatpush2.bf16.msra.mxu0 0
        %693 = vmatprep.subr.bf16.mxu0 0
        %694 = vmatpush2.bf16.msra.mxu0 0
        %695 = vmatprep.mubr.bf16.mxu0 0
        %696 = vmatmul.mubr.bf16.gmra.mxu0 %v661
        %v697 = vpop.f32.mrf.mxu0
        %v698 = vadd.f32 %v646, %v697
        %v699 = vpop.f32.mrf.mxu0
        %v700 = vpop.f32.mrf.mxu0
        %v701 = vpop.f32.mrf.mxu0
        %702 = vdwg.mxu0
        %v703 = vpack.c.bf16 %v698, %v698
        %704 = vst.msk [vmem:[%s554] sm:$0xf] %vm633, %v703
        %v705 = vld [vmem:[%s491] sm:$0xff]
        %v706 = vpack.c.bf16 %v705, %v705
        %v707 = vld [vmem:[#allocation11] sm:$0xf]
        %v708 = vld [vmem:[#allocation11 + $0x4] sm:$0xf]
        %v709 = vld [vmem:[#allocation11 + $0x8] sm:$0xf]
        %v710 = vld [vmem:[#allocation11 + $0xc] sm:$0xf]
        %v711 = vld [vmem:[%s8] sm:$0x1]
        %v713 = vlaneseq
        %v714 = vshrl.u32 %v713, 7
        %v715 = vsub.s32 0, %v714
        %v716 = vrot.slane %v711, %v715
        %v722 = vunpack.c.l.b16 %v707
        %v723 = vunpack.c.l.b16 %v708
        %v724 = vunpack.c.l.b16 %v709
        %v725 = vunpack.c.l.b16 %v710
        %v726 = vpack.c.b16 %v723, %v722
        %v727 = vpack.c.b16 %v725, %v724
        %v731 = vsel %vm588, %v706, 0
        %733 = vmatprep.subr.bf16.mxu0 0
        %734 = vmatpush1.bf16.msra.mxu0 0
        %735 = vmatprep.subr.bf16.mxu0 0
        %736 = vmatpush1.bf16.msra.mxu0 0
        %737 = vmatprep.subr.bf16.mxu0 0
        %738 = vmatpush1.bf16.msra.mxu0 0
        %739 = vmatprep.subr.bf16.mxu0 0
        %740 = vmatpush1.bf16.msra.mxu0 0
        %741 = vmatprep.subr.bf16.mxu0 0
        %742 = vmatpush1.bf16.msra.mxu0 0
        %743 = vmatprep.subr.bf16.mxu0 0
        %744 = vmatpush1.bf16.msra.mxu0 0
        %745 = vmatprep.subr.bf16.mxu0 0
        %746 = vmatpush1.bf16.msra.mxu0 %v727
        %747 = vmatprep.subr.bf16.mxu0 0
        %748 = vmatpush1.bf16.msra.mxu0 %v726
        %749 = vmatprep.subr.bf16.mxu0 0
        %750 = vmatpush2.bf16.msra.mxu0 0
        %751 = vmatprep.subr.bf16.mxu0 0
        %752 = vmatpush2.bf16.msra.mxu0 0
        %753 = vmatprep.subr.bf16.mxu0 0
        %754 = vmatpush2.bf16.msra.mxu0 0
        %755 = vmatprep.subr.bf16.mxu0 0
        %756 = vmatpush2.bf16.msra.mxu0 0
        %757 = vmatprep.subr.bf16.mxu0 0
        %758 = vmatpush2.bf16.msra.mxu0 0
        %759 = vmatprep.subr.bf16.mxu0 0
        %760 = vmatpush2.bf16.msra.mxu0 0
        %761 = vmatprep.subr.bf16.mxu0 0
        %762 = vmatpush2.bf16.msra.mxu0 0
        %763 = vmatprep.subr.bf16.mxu0 0
        %764 = vmatpush2.bf16.msra.mxu0 0
        %765 = vmatprep.mubr.bf16.mxu0 0
        %766 = vmatmul.mubr.bf16.gmra.mxu0 %v731
        %v767 = vpop.f32.mrf.mxu0
        %v768 = vadd.f32 %v716, %v767
        %v769 = vpop.f32.mrf.mxu0
        %v770 = vpop.f32.mrf.mxu0
        %v771 = vpop.f32.mrf.mxu0
        %772 = vdwg.mxu0
        %v773 = vpack.c.bf16 %v768, %v768
        %774 = vst.msk [vmem:[%s561] sm:$0xf] %vm633, %v773
        %s775 = sand.u32 %s269, 1
        %s776 = scalar_lea.sflag [#allocation4], %s775
        %s777 = sand.u32 %s269, 1
        %s778 = smul.addr %s777, 4
        %s779 = scalar_lea.vmem [#allocation13], %s778
        %s780 = sand.u32 %s37, 1
        %s781 = scalar_lea.sflag [#allocation15], %s780
        %s782 = sand.u32 %s297, 1
        %s783 = smul.addr %s782, 4
        %s784 = scalar_lea.vmem [#allocation14], %s783
        %s785 = sand.u32 %s37, 1
        %s786 = scalar_lea.sflag [#allocation15], %s785
        %s787 = sand.u32 %s325, 1
        %s788 = smul.addr %s787, 4
        %s789 = scalar_lea.vmem [#allocation16], %s788
        // Predicated region
        $region81: #{tpu_custom_call.1} parent=55 // pred_check
          %p790 = pneg %p279
        $region82: #{tpu_custom_call.1} parent=55 // pred_check_branch
          %792 = sbr.rel (%p790) target = $region84
        $region83: #{tpu_custom_call.1} parent=55 // pred_region
          %s794 = ssub.s32 64, 64
          %795 = vsyncadd %s776, %s794
          %s796 = sadd.s32 %s42, %s41
          %s797 = smul.addr %s796, 64
          %s798 = scalar_lea.hbm %s9, %s797
          %s800 = sshll.u32 %s779, 4
          %s801 = int_to_ptr.vmem [resolvable:$true] %s800
          %803 = dma.vmem_to_hbm [thread:$0]  %s801, 64, %s798, %s776
        $region84: #{tpu_custom_call.1} parent=55 // pred_fallthru
          _
        // Predicated region
        $region85: #{tpu_custom_call.1} parent=55 // pred_check
          %p804 = pneg %p307
        $region86: #{tpu_custom_call.1} parent=55 // pred_check_branch
          %806 = sbr.rel (%p804) target = $region88
        $region87: #{tpu_custom_call.1} parent=55 // pred_region
          %s808 = ssub.s32 64, 64
          %809 = vsyncadd %s781, %s808
          %s810 = sadd.s32 %s42, %s41
          %s811 = smul.addr %s810, 64
          %s812 = scalar_lea.hbm %s10, %s811
          %s814 = sshll.u32 %s784, 4
          %s815 = int_to_ptr.vmem [resolvable:$true] %s814
          %817 = dma.vmem_to_hbm [thread:$0]  %s815, 64, %s812, %s781
        $region88: #{tpu_custom_call.1} parent=55 // pred_fallthru
          _
        // Predicated region
        $region89: #{tpu_custom_call.1} parent=55 // pred_check
          %p818 = pneg %p335
        $region90: #{tpu_custom_call.1} parent=55 // pred_check_branch
          %820 = sbr.rel (%p818) target = $region92
        $region91: #{tpu_custom_call.1} parent=55 // pred_region
          %s822 = ssub.s32 64, 64
          %823 = vsyncadd %s786, %s822
          %s824 = sadd.s32 %s42, %s41
          %s825 = smul.addr %s824, 64
          %s826 = scalar_lea.hbm %s11, %s825
          %s828 = sshll.u32 %s789, 4
          %s829 = int_to_ptr.vmem [resolvable:$true] %s828
          %831 = dma.vmem_to_hbm [thread:$0]  %s829, 64, %s826, %s786
        $region92: #{tpu_custom_call.1} parent=55 // pred_fallthru
          _
      $region56: #{tpu_custom_call.1} parent=5 // pred_fallthru
        _
      %p832 = scmp.le.s32.totalorder 2, %s32
      // Predicated region
      $region93: #{tpu_custom_call.1} parent=5 // pred_check
        %p833 = pneg %p832
      $region94: #{tpu_custom_call.1} parent=5 // pred_check_branch
        %835 = sbr.rel (%p833) target = $region96
      $region95: #{tpu_custom_call.1} parent=5 // pred_region
        %s836 = ssub.s32 %s32, 2
        // Predicated region
        $region97: #{tpu_custom_call.1} parent=95 // pred_check
          %p837 = pneg %p285
        $region98: #{tpu_custom_call.1} parent=95 // pred_check_branch
          %839 = sbr.rel (%p837) target = $region100
        $region99: #{tpu_custom_call.1} parent=95 // pred_region
          %s840 = sand.u32 %s270, 1
          %s841 = scalar_lea.sflag [#allocation4], %s840
          %s842 = sand.u32 %s270, 1
          %s843 = smul.addr %s842, 4
          %s844 = scalar_lea.vmem [#allocation13], %s843
          %845 = dma.done %s841, 64
        $region100: #{tpu_custom_call.1} parent=95 // pred_fallthru
          _
        // Predicated region
        $region101: #{tpu_custom_call.1} parent=95 // pred_check
          %p846 = pneg %p313
        $region102: #{tpu_custom_call.1} parent=95 // pred_check_branch
          %848 = sbr.rel (%p846) target = $region104
        $region103: #{tpu_custom_call.1} parent=95 // pred_region
          %s849 = sand.u32 %s38, 1
          %s850 = scalar_lea.sflag [#allocation15], %s849
          %s851 = sand.u32 %s298, 1
          %s852 = smul.addr %s851, 4
          %s853 = scalar_lea.vmem [#allocation14], %s852
          %854 = dma.done %s850, 64
        $region104: #{tpu_custom_call.1} parent=95 // pred_fallthru
          _
        // Predicated region
        $region105: #{tpu_custom_call.1} parent=95 // pred_check
          %p855 = pneg %p341
        $region106: #{tpu_custom_call.1} parent=95 // pred_check_branch
          %857 = sbr.rel (%p855) target = $region108
        $region107: #{tpu_custom_call.1} parent=95 // pred_region
          %s858 = sand.u32 %s38, 1
          %s859 = scalar_lea.sflag [#allocation15], %s858
          %s860 = sand.u32 %s326, 1
          %s861 = smul.addr %s860, 4
          %s862 = scalar_lea.vmem [#allocation16], %s861
          %863 = dma.done %s859, 64
        $region108: #{tpu_custom_call.1} parent=95 // pred_fallthru
          _
      $region96: #{tpu_custom_call.1} parent=5 // pred_fallthru
        _
    $region6: #{tpu_custom_call.1} parent=1 // loop_footer
      %s36 = sadd.s32 1, %s32
    $region7: #{tpu_custom_call.1} parent=1 // loop_footer_branch
      %31 = sbr.rel target = $region3
    $region8: #{tpu_custom_call.1} parent=1 // loop_exit
      _
    %864 = vsyncpa [#allocation3], 1
    %s865 = scalar_lea.sflag [#allocation3], 1
    %866 = vsyncpa %s865, 1
    %867 = vsyncpa [#allocation6], 1
    %s868 = scalar_lea.sflag [#allocation6], 1
    %869 = vsyncpa %s868, 1
    %870 = vsyncpa [#allocation9], 1
    %871 = vsyncpa [#allocation12], 1
    %872 = vsyncpa [#allocation4], 1
    %s873 = scalar_lea.sflag [#allocation4], 1
    %874 = vsyncpa %s873, 1
    %875 = vsyncpa [#allocation15], 1
    %s876 = scalar_lea.sflag [#allocation15], 1
    %877 = vsyncpa %s876, 1

</llo_original>
